<compile_context>
chip_gen: v7x
topology: tpu7x:2x2x1
jax: 0.10.0
libtpu: 0.0.40
codegen_flags: <defaults>
</compile_context>

<pallas_src>
import functools

import jax
import jax.numpy as jnp
from jax import lax
from jax.experimental import pallas as pl
from jax.experimental.pallas import tpu as pltpu


def gcn_kernel(x_ref, w1tI_ref, b1_ref, w2_ref, o_ref):
    # x_ref:    (bt, S, N)  one batch tile, natural (batch, state, node) layout
    # w1tI_ref: (N, N)      conv1 weight with residual folded in: W1^T + I
    # b1_ref:   (1, N)      conv1 bias
    # w2_ref:   (S, S)      conv2 weight (out_state t, in_state s)
    # o_ref:    (bt, S, N)  final output layout -> no wrapper-side transpose
    bt, S, N = x_ref.shape

    # conv1 + residual as ONE tall matmul over the fused (bt*S, N) rows
    # (leading-dim merge is a free view; the RHS weight is pushed to the MXU once).
    x2 = x_ref[...].reshape(bt * S, N)
    h = jnp.dot(x2, w1tI_ref[...], preferred_element_type=jnp.float32) + b1_ref[...]
    # LeakyReLU(0.2) after the (folded) residual add. Module uses 0.2, not 0.01.
    h = jnp.where(h > 0, h, 0.2 * h)

    if bt == 1:
        # Single batch per grid step: plain 2-D MXU matmul, no batched dot needed.
        out = jnp.dot(w2_ref[...], h, preferred_element_type=jnp.float32)
        o_ref[...] = out.reshape(1, S, N).astype(o_ref.dtype)
    else:
        # Batched matmul (same form as the in-kernel flash-attention einsum);
        # output is already (bt, S, N) so no in-kernel transpose/relayout.
        h3 = h.reshape(bt, S, N)
        w2b = jnp.broadcast_to(w2_ref[...], (bt, S, S))
        out = lax.dot_general(
            w2b, h3,
            dimension_numbers=(((2,), (1,)), ((0,), (0,))),
            preferred_element_type=jnp.float32)
        o_ref[...] = out.astype(o_ref.dtype)


@functools.partial(jax.jit, static_argnames=("batch_tile",))
def gcn_forward(x, w1, b1, w2, *, batch_tile=None):
    B, S, N = x.shape

    # Fold residual into conv1: leaky(x @ W1^T + b1 + x) == leaky(x @ (W1^T + I) + b1).
    w1t_plus_I = w1.T + jnp.eye(N, dtype=w1.dtype)
    b1_2d = b1.reshape(1, N)

    if batch_tile is None:
        # Bound the per-step (x block + out block) footprint to ~2 MiB so the
        # design stays well inside v7x's smaller scoped VMEM, and keep at least
        # two grid steps when B > 1 so the batch axis shards across TensorCores
        # and the pipeline overlaps the next tile's DMA with compute.
        itemsize = jnp.dtype(x.dtype).itemsize
        per_batch_bytes = 2 * S * N * itemsize
        vmem_cap = max(1, (2 << 20) // per_batch_bytes)
        batch_tile = max(1, min(B, vmem_cap, pl.cdiv(B, 2)))
    bt = batch_tile
    grid = (pl.cdiv(B, bt),)

    return pl.pallas_call(
        gcn_kernel,
        out_shape=jax.ShapeDtypeStruct((B, S, N), x.dtype),
        grid_spec=pltpu.PrefetchScalarGridSpec(
            num_scalar_prefetch=0,
            grid=grid,
            in_specs=[
                pl.BlockSpec((bt, S, N), lambda i: (i, 0, 0)),
                # Constant index_maps: weights/bias stay VMEM-resident across
                # grid steps (not re-DMA'd per step).
                pl.BlockSpec((N, N), lambda i: (0, 0)),
                pl.BlockSpec((1, N), lambda i: (0, 0)),
                pl.BlockSpec((S, S), lambda i: (0, 0)),
            ],
            out_specs=pl.BlockSpec((bt, S, N), lambda i: (i, 0, 0)),
        ),
        compiler_params=pltpu.CompilerParams(
            dimension_semantics=("parallel",)),
    )(x, w1t_plus_I, b1_2d, w2)


def gcn_reference(x, w1, b1, w2):
    # Pure-JAX reference mirroring the PyTorch forward.
    h = jnp.einsum("bsn,mn->bsm", x, w1) + b1[None, None, :]
    h = h + x
    h = jnp.where(h > 0, h, 0.2 * h)
    return jnp.einsum("ts,bsn->btn", w2, h)


if __name__ == "__main__":
    B = 2
    num_state = 32   # S
    num_node = 16    # N

    key = jax.random.PRNGKey(0)
    kx, k1, kb, k2 = jax.random.split(key, 4)

    x = jax.random.normal(kx, (B, num_state, num_node), dtype=jnp.float32)
    # Shapes match nn.Conv1d(k=1) weights: conv1 (N,N) + bias (N,), conv2 (S,S), no bias.
    w1 = jax.random.normal(k1, (num_node, num_node), dtype=jnp.float32) * 0.1
    b1 = jax.random.normal(kb, (num_node,), dtype=jnp.float32) * 0.1
    w2 = jax.random.normal(k2, (num_state, num_state), dtype=jnp.float32) * 0.1

    out = gcn_forward(x, w1, b1, w2)
    jax.block_until_ready(out)

    ref = gcn_reference(x, w1, b1, w2)
    assert out.shape == (B, num_state, num_node)
    assert jnp.allclose(out, ref, atol=1e-4, rtol=1e-4)

    print("KERNEL_OK")
</pallas_src>

<mosaic_0001>
module attributes {stable_mosaic.version = 11 : i64} {
  func.func @gcn_kernel(%arg0: i32, %arg1: memref<1x32x16xf32, #tpu.memory_space<vmem>>, %arg2: memref<16x16xf32, #tpu.memory_space<vmem>>, %arg3: memref<1x16xf32, #tpu.memory_space<vmem>>, %arg4: memref<32x32xf32, #tpu.memory_space<vmem>>, %arg5: memref<1x32x16xf32, #tpu.memory_space<vmem>>) attributes {dimension_semantics = [#tpu.dimension_semantics<parallel>], iteration_bounds = array<i64: 2>, scalar_prefetch = 0 : i64, scratch_operands = 0 : i64, tpu.core_type = #tpu.core_type<tc>, window_params = [{transform_indices = @transform_0, window_bounds = array<i64: 1, 32, 16>}, {pipeline_mode = #tpu.pipeline_mode<synchronous>, transform_indices = @transform_1, window_bounds = array<i64: 16, 16>}, {pipeline_mode = #tpu.pipeline_mode<synchronous>, transform_indices = @transform_2, window_bounds = array<i64: 1, 16>}, {pipeline_mode = #tpu.pipeline_mode<synchronous>, transform_indices = @transform_3, window_bounds = array<i64: 32, 32>}, {transform_indices = @transform_4, window_bounds = array<i64: 1, 32, 16>}]} {
    %c0 = arith.constant 0 : index
    %c0_0 = arith.constant 0 : index
    %c0_1 = arith.constant 0 : index
    %0 = vector.load %arg1[%c0, %c0_0, %c0_1] : memref<1x32x16xf32, #tpu.memory_space<vmem>>, vector<1x32x16xf32>
    %1 = vector.shape_cast %0 : vector<1x32x16xf32> to vector<32x16xf32>
    %c0_2 = arith.constant 0 : index
    %c0_3 = arith.constant 0 : index
    %2 = vector.load %arg2[%c0_2, %c0_3] : memref<16x16xf32, #tpu.memory_space<vmem>>, vector<16x16xf32>
    %cst = arith.constant dense<0.000000e+00> : vector<32x16xf32>
    %3 = tpu.matmul %1, %2, %cst {dimension_numbers = #tpu.dot_dimension_numbers<[1], [0], [0], [1], [0, 0, 1, 1], [], []>} : vector<32x16xf32>, vector<16x16xf32>, vector<32x16xf32> -> vector<32x16xf32>
    %c0_4 = arith.constant 0 : index
    %c0_5 = arith.constant 0 : index
    %4 = vector.load %arg3[%c0_4, %c0_5] : memref<1x16xf32, #tpu.memory_space<vmem>>, vector<1x16xf32>
    %5 = vector.broadcast %4 : vector<1x16xf32> to vector<32x16xf32>
    %6 = arith.addf %3, %5 : vector<32x16xf32>
    %cst_6 = arith.constant 0.000000e+00 : f32
    %7 = vector.broadcast %cst_6 : f32 to vector<32x16xf32>
    %8 = arith.cmpf ogt, %6, %7 : vector<32x16xf32>
    %cst_7 = arith.constant 2.000000e-01 : f32
    %9 = vector.broadcast %cst_7 : f32 to vector<32x16xf32>
    %10 = arith.mulf %9, %6 : vector<32x16xf32>
    %11 = arith.select %8, %6, %10 : vector<32x16xi1>, vector<32x16xf32>
    %c0_8 = arith.constant 0 : index
    %c0_9 = arith.constant 0 : index
    %12 = vector.load %arg4[%c0_8, %c0_9] : memref<32x32xf32, #tpu.memory_space<vmem>>, vector<32x32xf32>
    %cst_10 = arith.constant dense<0.000000e+00> : vector<32x16xf32>
    %13 = tpu.matmul %12, %11, %cst_10 {dimension_numbers = #tpu.dot_dimension_numbers<[1], [0], [0], [1], [0, 0, 1, 1], [], []>} : vector<32x32xf32>, vector<32x16xf32>, vector<32x16xf32> -> vector<32x16xf32>
    %14 = vector.shape_cast %13 : vector<32x16xf32> to vector<1x32x16xf32>
    %c0_11 = arith.constant 0 : index
    %c0_12 = arith.constant 0 : index
    %c0_13 = arith.constant 0 : index
    %15 = vector.load %arg5[%c0_11, %c0_12, %c0_13] : memref<1x32x16xf32, #tpu.memory_space<vmem>>, vector<1x32x16xf32>
    tpu.vector_store %arg5[%c0_11, %c0_12, %c0_13], %14 {strides = array<i32>} : memref<1x32x16xf32, #tpu.memory_space<vmem>>, vector<1x32x16xf32>,
    return
  }
  func.func @transform_0(%arg0: i32) -> (i32, i32, i32) {
    %c0_i32 = arith.constant 0 : i32
    %c0_i32_0 = arith.constant 0 : i32
    %c0_i32_1 = arith.constant 0 : i32
    return %arg0, %c0_i32, %c0_i32_0 : i32, i32, i32
  }
  func.func @transform_1(%arg0: i32) -> (i32, i32) {
    %c0_i32 = arith.constant 0 : i32
    %c0_i32_0 = arith.constant 0 : i32
    %c0_i32_1 = arith.constant 0 : i32
    return %c0_i32, %c0_i32_0 : i32, i32
  }
  func.func @transform_2(%arg0: i32) -> (i32, i32) {
    %c0_i32 = arith.constant 0 : i32
    %c0_i32_0 = arith.constant 0 : i32
    %c0_i32_1 = arith.constant 0 : i32
    return %c0_i32, %c0_i32_0 : i32, i32
  }
  func.func @transform_3(%arg0: i32) -> (i32, i32) {
    %c0_i32 = arith.constant 0 : i32
    %c0_i32_0 = arith.constant 0 : i32
    %c0_i32_1 = arith.constant 0 : i32
    return %c0_i32, %c0_i32_0 : i32, i32
  }
  func.func @transform_4(%arg0: i32) -> (i32, i32, i32) {
    %c0_i32 = arith.constant 0 : i32
    %c0_i32_0 = arith.constant 0 : i32
    %c0_i32_1 = arith.constant 0 : i32
    return %arg0, %c0_i32, %c0_i32_0 : i32, i32, i32
  }
}

</mosaic_0001>

<llo_original>
// kernel: gcn_forward.1
$region0: #{gcn_forward.1}
  #allocation0 [shape = 'u32[]', space=smem, size = 0x4, offset = 0x4, fixed_abs, tag = 'smem constant byte address 0x4 - core index']
  #allocation1 [shape = 'u32[144,128]{1,0:T(1,128)}', space=vmem, size = 0x12000, scoped, tag = 'internal scratch']
  %s0 = inlined_call_operand.vmem [shape: f32[2,32,16], index: 0, kind: input, shape index: {}]
  %s1 = inlined_call_operand.vmem [shape: f32[16,16], index: 1, kind: input, shape index: {}]
  %s2 = inlined_call_operand.vmem [shape: f32[1,16], index: 2, kind: input, shape index: {}]
  %s3 = inlined_call_operand.vmem [shape: f32[32,32], index: 3, kind: input, shape index: {}]
  %s4 = inlined_call_operand.vmem [shape: f32[2,32,16], index: 4, kind: output, shape index: {}]
  %s5 = sld [smem:[#allocation0]]
  $region49: #{gcn_forward.1} parent=0
    _
  %s7 = ssub.s32 1, %s5
  %s8 = scalar_select 0, %s7, %s5
  loop: start=0, step=1, limit=4
  $region2: #{gcn_forward.1} parent=0 // loop_pre_header
    _
  $region3: #{gcn_forward.1} parent=0 // loop_header
    %s10 = sphi 0, %s14
    %p11 = scmp.ge.s32.totalorder %s10, 4
    %s20 = sphi 0, %s22
    %s23 = sphi 0, %s20
    %s24 = sphi 0, %s23
    %s40 = sphi 0, %s24
    %s44 = sphi 0, %s44
    %s46 = sphi 0, %s44
    %s47 = sphi 0, %s46
    %s61 = sphi 0, %s47
    %s65 = sphi 0, %s65
    %s67 = sphi 0, %s65
    %s68 = sphi 0, %s67
    %s82 = sphi 0, %s68
    %s86 = sphi 0, %s86
    %s88 = sphi 0, %s86
    %s89 = sphi 0, %s88
    %s103 = sphi 0, %s89
    %s109 = sphi 0, %s111
    %s112 = sphi 0, %s109
    %s113 = sphi 0, %s112
    %s129 = sphi 0, %s113
  $region4: #{gcn_forward.1} parent=0 // loop_header_branch
    %13 = sbr.rel (%p11) target = $region8
  $region5: #{gcn_forward.1} parent=0 // loop_body
    %s15 = ssub.s32 %s10, 1
    %s16 = ssub.s32 %s10, 2
    %s17 = sadd.s32 %s10, 1
    %s18 = ssub.s32 %s10, %s17
    %p19 = scmp.eq.s32.totalorder %s18, 0
    %s21 = sadd.s32 %s20, 1
    %s22 = scalar_select %p19, %s20, %s21
    %p25 = pneg %p19
    %p26 = scmp.eq.s32.totalorder %s10, 1
    %p27 = por %p25, %p26
    %p28 = scmp.ne.s32.totalorder %s20, %s23
    %p29 = scmp.eq.s32.totalorder %s10, 0
    %p30 = por %p28, %p29
    %p31 = scmp.ne.s32.totalorder %s20, %s23
    %p32 = scmp.eq.s32.totalorder %s15, 1
    %p33 = por %p31, %p32
    %p34 = scmp.ne.s32.totalorder %s23, %s24
    %p35 = scmp.eq.s32.totalorder %s15, 0
    %p36 = por %p34, %p35
    %p37 = scmp.ne.s32.totalorder %s23, %s24
    %p38 = scmp.eq.s32.totalorder %s16, 1
    %p39 = por %p37, %p38
    %p41 = scmp.ne.s32.totalorder %s24, %s40
    %p42 = scmp.eq.s32.totalorder %s16, 0
    %p43 = por %p41, %p42
    %s45 = sadd.s32 %s44, 1
    %p48 = scmp.eq.s32.totalorder %s10, 1
    %p49 = scmp.ne.s32.totalorder %s44, %s46
    %p50 = scmp.eq.s32.totalorder %s10, 0
    %p51 = por %p49, %p50
    %p52 = scmp.ne.s32.totalorder %s44, %s46
    %p53 = scmp.eq.s32.totalorder %s15, 1
    %p54 = por %p52, %p53
    %p55 = scmp.ne.s32.totalorder %s46, %s47
    %p56 = scmp.eq.s32.totalorder %s15, 0
    %p57 = por %p55, %p56
    %p58 = scmp.ne.s32.totalorder %s46, %s47
    %p59 = scmp.eq.s32.totalorder %s16, 1
    %p60 = por %p58, %p59
    %p62 = scmp.ne.s32.totalorder %s47, %s61
    %p63 = scmp.eq.s32.totalorder %s16, 0
    %p64 = por %p62, %p63
    %s66 = sadd.s32 %s65, 1
    %p69 = scmp.eq.s32.totalorder %s10, 1
    %p70 = scmp.ne.s32.totalorder %s65, %s67
    %p71 = scmp.eq.s32.totalorder %s10, 0
    %p72 = por %p70, %p71
    %p73 = scmp.ne.s32.totalorder %s65, %s67
    %p74 = scmp.eq.s32.totalorder %s15, 1
    %p75 = por %p73, %p74
    %p76 = scmp.ne.s32.totalorder %s67, %s68
    %p77 = scmp.eq.s32.totalorder %s15, 0
    %p78 = por %p76, %p77
    %p79 = scmp.ne.s32.totalorder %s67, %s68
    %p80 = scmp.eq.s32.totalorder %s16, 1
    %p81 = por %p79, %p80
    %p83 = scmp.ne.s32.totalorder %s68, %s82
    %p84 = scmp.eq.s32.totalorder %s16, 0
    %p85 = por %p83, %p84
    %s87 = sadd.s32 %s86, 1
    %p90 = scmp.eq.s32.totalorder %s10, 1
    %p91 = scmp.ne.s32.totalorder %s86, %s88
    %p92 = scmp.eq.s32.totalorder %s10, 0
    %p93 = por %p91, %p92
    %p94 = scmp.ne.s32.totalorder %s86, %s88
    %p95 = scmp.eq.s32.totalorder %s15, 1
    %p96 = por %p94, %p95
    %p97 = scmp.ne.s32.totalorder %s88, %s89
    %p98 = scmp.eq.s32.totalorder %s15, 0
    %p99 = por %p97, %p98
    %p100 = scmp.ne.s32.totalorder %s88, %s89
    %p101 = scmp.eq.s32.totalorder %s16, 1
    %p102 = por %p100, %p101
    %p104 = scmp.ne.s32.totalorder %s89, %s103
    %p105 = scmp.eq.s32.totalorder %s16, 0
    %p106 = por %p104, %p105
    %s107 = ssub.s32 %s10, %s17
    %p108 = scmp.eq.s32.totalorder %s107, 0
    %s110 = sadd.s32 %s109, 1
    %s111 = scalar_select %p108, %s109, %s110
    %p114 = pneg %p108
    %p115 = scmp.eq.s32.totalorder %s10, 1
    %p116 = por %p114, %p115
    %p117 = scmp.ne.s32.totalorder %s109, %s112
    %p118 = scmp.eq.s32.totalorder %s10, 0
    %p119 = por %p117, %p118
    %p120 = scmp.ne.s32.totalorder %s109, %s112
    %p121 = scmp.eq.s32.totalorder %s15, 1
    %p122 = por %p120, %p121
    %p123 = scmp.ne.s32.totalorder %s112, %s113
    %p124 = scmp.eq.s32.totalorder %s15, 0
    %p125 = por %p123, %p124
    %p126 = scmp.ne.s32.totalorder %s112, %s113
    %p127 = scmp.eq.s32.totalorder %s16, 1
    %p128 = por %p126, %p127
    %p130 = scmp.ne.s32.totalorder %s113, %s129
    %p131 = scmp.eq.s32.totalorder %s16, 0
    %p132 = por %p130, %p131
    %p133 = scmp.le.s32.totalorder 1, %s10
    %p134 = scmp.lt.s32.totalorder %s10, 3
    %p135 = pnand %p133, %p134
    %p136 = pneg %p135
    // Predicated region
    $region9: #{gcn_forward.1} parent=5 // pred_check
      _
    $region10: #{gcn_forward.1} parent=5 // pred_check_branch
      %138 = sbr.rel (%p135) target = $region12
    $region11: #{gcn_forward.1} parent=5 // pred_region
      %s139 = ssub.s32 %s10, 1
      // Predicated region
      $region13: #{gcn_forward.1} parent=11 // pred_check
        %p140 = pneg %p57
      $region14: #{gcn_forward.1} parent=11 // pred_check_branch
        %142 = sbr.rel (%p140) target = $region16
      $region15: #{gcn_forward.1} parent=11 // pred_region
        _
      $region16: #{gcn_forward.1} parent=11 // pred_fallthru
        _
      // Predicated region
      $region17: #{gcn_forward.1} parent=11 // pred_check
        %p143 = pneg %p78
      $region18: #{gcn_forward.1} parent=11 // pred_check_branch
        %145 = sbr.rel (%p143) target = $region20
      $region19: #{gcn_forward.1} parent=11 // pred_region
        _
      $region20: #{gcn_forward.1} parent=11 // pred_fallthru
        _
      // Predicated region
      $region21: #{gcn_forward.1} parent=11 // pred_check
        %p146 = pneg %p99
      $region22: #{gcn_forward.1} parent=11 // pred_check_branch
        %148 = sbr.rel (%p146) target = $region24
      $region23: #{gcn_forward.1} parent=11 // pred_region
        _
      $region24: #{gcn_forward.1} parent=11 // pred_fallthru
        _
    $region12: #{gcn_forward.1} parent=5 // pred_fallthru
      _
    %p149 = scmp.lt.s32.totalorder %s10, 2
    // Predicated region
    $region25: #{gcn_forward.1} parent=5 // pred_check
      %p150 = pneg %p149
    $region26: #{gcn_forward.1} parent=5 // pred_check_branch
      %152 = sbr.rel (%p150) target = $region28
    $region27: #{gcn_forward.1} parent=5 // pred_region
      // Predicated region
      $region29: #{gcn_forward.1} parent=27 // pred_check
        %p153 = pneg %p30
      $region30: #{gcn_forward.1} parent=27 // pred_check_branch
        %155 = sbr.rel (%p153) target = $region32
      $region31: #{gcn_forward.1} parent=27 // pred_region
        %p156 = scmp.lt.s32.totalorder %s10, 1
        %s157 = scalar_select %p156, %s10, 1
        %s158 = smul.addr %s157, 4
        %s159 = smul.addr %s158, 8
        %s160 = scalar_lea.vmem %s0, %s159
      $region32: #{gcn_forward.1} parent=27 // pred_fallthru
        _
    $region28: #{gcn_forward.1} parent=5 // pred_fallthru
      _
    %p161 = scmp.le.s32.totalorder 1, %s10
    %p162 = scmp.lt.s32.totalorder %s10, 3
    %p163 = pnand %p161, %p162
    %p164 = pneg %p163
    // Predicated region
    $region33: #{gcn_forward.1} parent=5 // pred_check
      _
    $region34: #{gcn_forward.1} parent=5 // pred_check_branch
      %166 = sbr.rel (%p163) target = $region36
    $region35: #{gcn_forward.1} parent=5 // pred_region
      %s167 = ssub.s32 %s10, 1
      %p168 = scmp.lt.s32.totalorder %s15, 1
      %s169 = scalar_select %p168, %s15, 1
      %s170 = smul.addr %s169, 4
      %s171 = smul.addr %s170, 8
      %s172 = scalar_lea.vmem %s0, %s171
      %p173 = pneg %p36
      %p174 = pneg %p33
      %p175 = pneg %p57
      %p176 = pneg %p54
      %p177 = pneg %p78
      %p178 = pneg %p75
      %p179 = pneg %p99
      %p180 = pneg %p96
      %p181 = pneg %p125
      %p182 = pneg %p122
      %p183 = scmp.lt.s32.totalorder %s15, 1
      %s184 = scalar_select %p183, %s15, 1
      %s185 = smul.addr %s184, 4
      %s186 = smul.addr %s185, 8
      %s187 = scalar_lea.vmem %s4, %s186
      %p188 = scmp.lt.s32.totalorder %s15, 1
      %s189 = scalar_select %p188, %s15, 1
      %s190 = smul.addr %s189, 4
      %s191 = smul.addr %s190, 8
      %s192 = scalar_lea.vmem %s0, %s191
      %p193 = scmp.lt.s32.totalorder %s15, 1
      %s194 = scalar_select %p193, %s15, 1
      %s195 = smul.addr %s194, 4
      %s196 = smul.addr %s195, 8
      %s197 = scalar_lea.vmem %s4, %s196
      %v198 = vld [vmem:[%s192] sm:$0xff]
      %v199 = vld [vmem:[%s192 + $0x8] sm:$0xff]
      %v200 = vld [vmem:[%s192 + $0x10] sm:$0xff]
      %v201 = vld [vmem:[%s192 + $0x18] sm:$0xff]
      %v202 = vld [vmem:[%s1] sm:$0xff]
      %v203 = vld [vmem:[%s1 + $0x8] sm:$0xff]
      %v204 = vld [vmem:[%s2] sm:$0x1]
      %v206 = vlaneseq
      %v207 = vshrl.u32 %v206, 7
      %v208 = vsub.s32 0, %v207
      %v209 = vrot.slane %v204, %v208
      %vm211 = vcmask 130048
      %v213 = vsel %vm211, %v198, 0
      %v216 = vsel %vm211, %v199, 0
      %v219 = vsel %vm211, %v200, 0
      %v222 = vsel %vm211, %v201, 0
      %224 = vmatprep.subr.mxu0 0.0
      %225 = vmatpush1.msra.mxu0 %v202
      %226 = vmatprep.subr.mxu0 0.0
      %227 = vmatpush1.msra.mxu0 %v203
      %228 = vmatprep.subr.mxu0 0.0
      %229 = vmatpush1.msra.mxu0 0.0
      %230 = vmatprep.subr.mxu0 0.0
      %231 = vmatpush1.msra.mxu0 0.0
      %232 = vmatprep.subr.mxu0 0.0
      %233 = vmatpush1.msra.mxu0 0.0
      %234 = vmatprep.subr.mxu0 0.0
      %235 = vmatpush1.msra.mxu0 0.0
      %236 = vmatprep.subr.mxu0 0.0
      %237 = vmatpush1.msra.mxu0 0.0
      %238 = vmatprep.subr.mxu0 0.0
      %239 = vmatpush1.msra.mxu0 0.0
      %240 = vmatprep.subr.mxu0 0.0
      %241 = vmatpush1.msra.mxu0 0.0
      %242 = vmatprep.subr.mxu0 0.0
      %243 = vmatpush1.msra.mxu0 0.0
      %244 = vmatprep.subr.mxu0 0.0
      %245 = vmatpush1.msra.mxu0 0.0
      %246 = vmatprep.subr.mxu0 0.0
      %247 = vmatpush1.msra.mxu0 0.0
      %248 = vmatprep.subr.mxu0 0.0
      %249 = vmatpush1.msra.mxu0 0.0
      %250 = vmatprep.subr.mxu0 0.0
      %251 = vmatpush1.msra.mxu0 0.0
      %252 = vmatprep.subr.mxu0 0.0
      %253 = vmatpush1.msra.mxu0 0.0
      %254 = vmatprep.subr.mxu0 0.0
      %255 = vmatpush1.msra.mxu0 0.0
      %256 = vmatprep.subr.mxu0 0.0
      %257 = vmatpush1.msra.mxu0 0.0
      %258 = vmatprep.subr.mxu0 0.0
      %259 = vmatpush1.msra.mxu0 0.0
      %260 = vmatprep.subr.mxu0 0.0
      %261 = vmatpush1.msra.mxu0 0.0
      %262 = vmatprep.subr.mxu0 0.0
      %263 = vmatpush1.msra.mxu0 0.0
      %264 = vmatprep.subr.mxu0 0.0
      %265 = vmatpush1.msra.mxu0 0.0
      %266 = vmatprep.subr.mxu0 0.0
      %267 = vmatpush1.msra.mxu0 0.0
      %268 = vmatprep.subr.mxu0 0.0
      %269 = vmatpush1.msra.mxu0 0.0
      %270 = vmatprep.subr.mxu0 0.0
      %271 = vmatpush1.msra.mxu0 0.0
      %272 = vmatprep.subr.mxu0 0.0
      %273 = vmatpush1.msra.mxu0 0.0
      %274 = vmatprep.subr.mxu0 0.0
      %275 = vmatpush1.msra.mxu0 0.0
      %276 = vmatprep.subr.mxu0 0.0
      %277 = vmatpush1.msra.mxu0 0.0
      %278 = vmatprep.subr.mxu0 0.0
      %279 = vmatpush1.msra.mxu0 0.0
      %280 = vmatprep.subr.mxu0 0.0
      %281 = vmatpush1.msra.mxu0 0.0
      %282 = vmatprep.subr.mxu0 0.0
      %283 = vmatpush1.msra.mxu0 0.0
      %284 = vmatprep.subr.mxu0 0.0
      %285 = vmatpush1.msra.mxu0 0.0
      %286 = vmatprep.subr.mxu0 0.0
      %287 = vmatpush1.msra.mxu0 0.0
      %288 = vmatprep.mubr.f32.mxu0 0.0
      %289 = vmatmul.mubr.f32.gmra.mrb[0].mxu0 %v213
      %v290 = vpop.f32.mrb[0].mxu0
      %v291 = vadd.f32 %v209, %v290
      %v292 = vpop.f32.mrb[0].mxu0
      %293 = vmatprep.mubr.f32.mxu0 0.0
      %294 = vmatmul.mubr.f32.gmra.mrb[0].mxu0 %v216
      %v295 = vpop.f32.mrb[0].mxu0
      %v296 = vadd.f32 %v209, %v295
      %v297 = vpop.f32.mrb[0].mxu0
      %298 = vmatprep.mubr.f32.mxu0 0.0
      %299 = vmatmul.mubr.f32.gmra.mrb[0].mxu0 %v219
      %v300 = vpop.f32.mrb[0].mxu0
      %v301 = vadd.f32 %v209, %v300
      %v302 = vpop.f32.mrb[0].mxu0
      %303 = vmatprep.mubr.f32.mxu0 0.0
      %304 = vmatmul.mubr.f32.gmra.mrb[0].mxu0 %v222
      %v305 = vpop.f32.mrb[0].mxu0
      %v306 = vadd.f32 %v209, %v305
      %v307 = vpop.f32.mrb[0].mxu0
      %308 = vdwg.mxu0
      %vm309 = vcmp.gt.f32.partialorder %v291, 0.0
      %vm310 = vcmp.gt.f32.partialorder %v296, 0.0
      %vm311 = vcmp.gt.f32.partialorder %v301, 0.0
      %vm312 = vcmp.gt.f32.partialorder %v306, 0.0
      %v313 = vmul.f32 %v291, 0.2
      %v314 = vmul.f32 %v296, 0.2
      %v315 = vmul.f32 %v301, 0.2
      %v316 = vmul.f32 %v306, 0.2
      %v317 = vsel %vm309, %v291, %v313
      %v318 = vsel %vm310, %v296, %v314
      %v319 = vsel %vm311, %v301, %v315
      %v320 = vsel %vm312, %v306, %v316
      %v321 = vld [vmem:[%s3] sm:$0xff]
      %v322 = vld [vmem:[%s3 + $0x8] sm:$0xff]
      %v323 = vld [vmem:[%s3 + $0x10] sm:$0xff]
      %v324 = vld [vmem:[%s3 + $0x18] sm:$0xff]
      %vm325 = vcmask 261120
      %v327 = vsel %vm325, %v321, 0
      %v330 = vsel %vm325, %v322, 0
      %v333 = vsel %vm325, %v323, 0
      %v336 = vsel %vm325, %v324, 0
      %338 = vmatprep.subr.mxu0 0.0
      %339 = vmatpush1.msra.mxu0 %v317
      %340 = vmatprep.subr.mxu0 0.0
      %341 = vmatpush1.msra.mxu0 %v318
      %342 = vmatprep.subr.mxu0 0.0
      %343 = vmatpush1.msra.mxu0 %v319
      %344 = vmatprep.subr.mxu0 0.0
      %345 = vmatpush1.msra.mxu0 %v320
      %346 = vmatprep.subr.mxu0 0.0
      %347 = vmatpush1.msra.mxu0 0.0
      %348 = vmatprep.subr.mxu0 0.0
      %349 = vmatpush1.msra.mxu0 0.0
      %350 = vmatprep.subr.mxu0 0.0
      %351 = vmatpush1.msra.mxu0 0.0
      %352 = vmatprep.subr.mxu0 0.0
      %353 = vmatpush1.msra.mxu0 0.0
      %354 = vmatprep.subr.mxu0 0.0
      %355 = vmatpush1.msra.mxu0 0.0
      %356 = vmatprep.subr.mxu0 0.0
      %357 = vmatpush1.msra.mxu0 0.0
      %358 = vmatprep.subr.mxu0 0.0
      %359 = vmatpush1.msra.mxu0 0.0
      %360 = vmatprep.subr.mxu0 0.0
      %361 = vmatpush1.msra.mxu0 0.0
      %362 = vmatprep.subr.mxu0 0.0
      %363 = vmatpush1.msra.mxu0 0.0
      %364 = vmatprep.subr.mxu0 0.0
      %365 = vmatpush1.msra.mxu0 0.0
      %366 = vmatprep.subr.mxu0 0.0
      %367 = vmatpush1.msra.mxu0 0.0
      %368 = vmatprep.subr.mxu0 0.0
      %369 = vmatpush1.msra.mxu0 0.0
      %370 = vmatprep.subr.mxu0 0.0
      %371 = vmatpush1.msra.mxu0 0.0
      %372 = vmatprep.subr.mxu0 0.0
      %373 = vmatpush1.msra.mxu0 0.0
      %374 = vmatprep.subr.mxu0 0.0
      %375 = vmatpush1.msra.mxu0 0.0
      %376 = vmatprep.subr.mxu0 0.0
      %377 = vmatpush1.msra.mxu0 0.0
      %378 = vmatprep.subr.mxu0 0.0
      %379 = vmatpush1.msra.mxu0 0.0
      %380 = vmatprep.subr.mxu0 0.0
      %381 = vmatpush1.msra.mxu0 0.0
      %382 = vmatprep.subr.mxu0 0.0
      %383 = vmatpush1.msra.mxu0 0.0
      %384 = vmatprep.subr.mxu0 0.0
      %385 = vmatpush1.msra.mxu0 0.0
      %386 = vmatprep.subr.mxu0 0.0
      %387 = vmatpush1.msra.mxu0 0.0
      %388 = vmatprep.subr.mxu0 0.0
      %389 = vmatpush1.msra.mxu0 0.0
      %390 = vmatprep.subr.mxu0 0.0
      %391 = vmatpush1.msra.mxu0 0.0
      %392 = vmatprep.subr.mxu0 0.0
      %393 = vmatpush1.msra.mxu0 0.0
      %394 = vmatprep.subr.mxu0 0.0
      %395 = vmatpush1.msra.mxu0 0.0
      %396 = vmatprep.subr.mxu0 0.0
      %397 = vmatpush1.msra.mxu0 0.0
      %398 = vmatprep.subr.mxu0 0.0
      %399 = vmatpush1.msra.mxu0 0.0
      %400 = vmatprep.subr.mxu0 0.0
      %401 = vmatpush1.msra.mxu0 0.0
      %402 = vmatprep.mubr.f32.mxu0 0.0
      %403 = vmatmul.mubr.f32.gmra.mrb[0].mxu0 %v327
      %v404 = vpop.f32.mrb[0].mxu0
      %v405 = vadd.f32 0.0, %v404
      %v406 = vpop.f32.mrb[0].mxu0
      %407 = vmatprep.mubr.f32.mxu0 0.0
      %408 = vmatmul.mubr.f32.gmra.mrb[0].mxu0 %v330
      %v409 = vpop.f32.mrb[0].mxu0
      %v410 = vadd.f32 0.0, %v409
      %v411 = vpop.f32.mrb[0].mxu0
      %412 = vmatprep.mubr.f32.mxu0 0.0
      %413 = vmatmul.mubr.f32.gmra.mrb[0].mxu0 %v333
      %v414 = vpop.f32.mrb[0].mxu0
      %v415 = vadd.f32 0.0, %v414
      %v416 = vpop.f32.mrb[0].mxu0
      %417 = vmatprep.mubr.f32.mxu0 0.0
      %418 = vmatmul.mubr.f32.gmra.mrb[0].mxu0 %v336
      %v419 = vpop.f32.mrb[0].mxu0
      %v420 = vadd.f32 0.0, %v419
      %v421 = vpop.f32.mrb[0].mxu0
      %422 = vdwg.mxu0
      %423 = vst.msk [vmem:[%s197] sm:$0xff] %vm211, %v405
      %424 = vst.msk [vmem:[%s197 + $0x8] sm:$0xff] %vm211, %v410
      %425 = vst.msk [vmem:[%s197 + $0x10] sm:$0xff] %vm211, %v415
      %426 = vst.msk [vmem:[%s197 + $0x18] sm:$0xff] %vm211, %v420
      %p427 = scmp.lt.s32.totalorder %s15, 1
      %s428 = scalar_select %p427, %s15, 1
      %s429 = smul.addr %s428, 4
      %s430 = smul.addr %s429, 8
      %s431 = scalar_lea.vmem %s4, %s430
      // Predicated region
      $region37: #{gcn_forward.1} parent=35 // pred_check
        %p432 = pneg %p122
      $region38: #{gcn_forward.1} parent=35 // pred_check_branch
        %434 = sbr.rel (%p432) target = $region40
      $region39: #{gcn_forward.1} parent=35 // pred_region
        _
      $region40: #{gcn_forward.1} parent=35 // pred_fallthru
        _
    $region36: #{gcn_forward.1} parent=5 // pred_fallthru
      _
    %p435 = scmp.le.s32.totalorder 2, %s10
    // Predicated region
    $region41: #{gcn_forward.1} parent=5 // pred_check
      %p436 = pneg %p435
    $region42: #{gcn_forward.1} parent=5 // pred_check_branch
      %438 = sbr.rel (%p436) target = $region44
    $region43: #{gcn_forward.1} parent=5 // pred_region
      %s439 = ssub.s32 %s10, 2
      // Predicated region
      $region45: #{gcn_forward.1} parent=43 // pred_check
        %p440 = pneg %p128
      $region46: #{gcn_forward.1} parent=43 // pred_check_branch
        %442 = sbr.rel (%p440) target = $region48
      $region47: #{gcn_forward.1} parent=43 // pred_region
        %p443 = scmp.lt.s32.totalorder %s16, 1
        %s444 = scalar_select %p443, %s16, 1
        %s445 = smul.addr %s444, 4
        %s446 = smul.addr %s445, 8
        %s447 = scalar_lea.vmem %s4, %s446
      $region48: #{gcn_forward.1} parent=43 // pred_fallthru
        _
    $region44: #{gcn_forward.1} parent=5 // pred_fallthru
      _
  $region6: #{gcn_forward.1} parent=0 // loop_footer
    %s14 = sadd.s32 1, %s10
  $region7: #{gcn_forward.1} parent=0 // loop_footer_branch
    %9 = sbr.rel target = $region3
  $region8: #{gcn_forward.1} parent=0 // loop_exit
    _

</llo_original>
